<compile_context>
chip_gen: v6e
topology: v6e:2x2x1
jax: 0.10.0
libtpu: 0.0.40
codegen_flags: <defaults>
</compile_context>

<pallas_src>
import jax
import jax.numpy as jnp
from jax import lax
from jax.experimental import pallas as pl
from jax.experimental.pallas import tpu as pltpu


def _f2t_kernel_dmajor(x_ref, w_ref, shift_ref, pool_ref, tokpos_ref, o_ref,
                       acc_ref):
    """D-major layout (D < 128): HW is the lane axis of the conv intermediate.

    x_ref:      (Cin_blk, HW)   one batch element, one Cin block
    w_ref:      (D, Cin_blk)    1x1 conv weight with BN scale folded in
    shift_ref:  (D, 1)          BN shift (f32)
    pool_ref:   (HW, T)         pool matrix; column 0 (cls slot) is all-zero
    tokpos_ref: (D, T)          cls+pos folded constant (f32)
    o_ref:      (D, T)          output block (transposed to (T, D) in wrapper)
    acc_ref:    (D, HW) f32     conv accumulator across the Cin grid axis
    """
    k = pl.program_id(1)

    @pl.when(k == 0)
    def _():
        acc_ref[...] = jnp.zeros_like(acc_ref)

    # Partial 1x1 conv over this Cin block: (D, Cin_blk) @ (Cin_blk, HW).
    acc_ref[...] += lax.dot_general(
        w_ref[...], x_ref[...], (((1,), (0,)), ((), ())),
        preferred_element_type=jnp.float32)

    @pl.when(k == pl.num_programs(1) - 1)
    def _():
        pool = pool_ref[...]
        # BN shift + ReLU once per batch element (not once per Cin block).
        y = jnp.maximum(acc_ref[...] + shift_ref[...], 0.0)
        y = y.astype(pool.dtype)
        # Adaptive average pool as a matmul; col 0 of pool is zero (cls slot).
        pooled = lax.dot_general(
            y, pool, (((1,), (0,)), ((), ())),
            preferred_element_type=jnp.float32)                     # (D, T)
        o_ref[...] = (pooled + tokpos_ref[...]).astype(o_ref.dtype)


def _f2t_kernel_dminor(x_ref, wt_ref, shift_ref, pool_ref, tokpos_ref, o_ref,
                       acc_ref):
    """D-minor layout (D >= 128): D is the lane axis everywhere; the (B, T, D)
    output is stored lane-dense and needs no wrapper transpose.

    x_ref:      (Cin_blk, HW)
    wt_ref:     (Cin_blk, D)    transposed fused conv weight
    shift_ref:  (1, D)          BN shift (f32)
    pool_ref:   (HW, T)         pool matrix; column 0 (cls slot) is all-zero
    tokpos_ref: (T, D)          cls+pos folded constant (f32)
    o_ref:      (T, D)
    acc_ref:    (HW, D) f32
    """
    k = pl.program_id(1)

    @pl.when(k == 0)
    def _():
        acc_ref[...] = jnp.zeros_like(acc_ref)

    # (Cin_blk, HW)^T @ (Cin_blk, D) -> (HW, D): contract dim 0 of both
    # (the same "TN" dot_general pattern attention dK/dV kernels use).
    acc_ref[...] += lax.dot_general(
        x_ref[...], wt_ref[...], (((0,), (0,)), ((), ())),
        preferred_element_type=jnp.float32)

    @pl.when(k == pl.num_programs(1) - 1)
    def _():
        pool = pool_ref[...]
        y = jnp.maximum(acc_ref[...] + shift_ref[...], 0.0)
        y = y.astype(pool.dtype)
        # (HW, T)^T @ (HW, D) -> (T, D).
        pooled_t = lax.dot_general(
            pool, y, (((0,), (0,)), ((), ())),
            preferred_element_type=jnp.float32)                     # (T, D)
        o_ref[...] = (pooled_t + tokpos_ref[...]).astype(o_ref.dtype)


def f2t_forward(x_nchw, conv_w, gamma, beta, running_mean, running_var,
                cls_token, position, p, eps=1e-5, d_minor=None,
                block_cin=None):
    B, Cin, H, W = x_nchw.shape
    D = conv_w.shape[0]
    # TODO(synk): PyTorch AdaptiveAvgPool2d also handles non-divisible H/W
    # (variable-size windows); only the divisible case is implemented here.
    assert H % p == 0 and W % p == 0, "adaptive pool needs divisible spatial dims"
    kh, kw = H // p, W // p
    HW = H * W
    T = p * p + 1

    # Lane-dense (B, T, D) output when D fills at least one vreg of lanes.
    if d_minor is None:
        d_minor = D >= 128

    # Matmul input dtype follows x: pass bf16 x (kept bf16 in HBM upstream) for
    # the bandwidth fast path; accumulation is always f32.
    compute_dtype = x_nchw.dtype
    x = x_nchw.reshape(B, Cin, HW)                     # NCHW; HW is the lane axis

    f32 = jnp.float32
    # ---- fold BatchNorm (eval mode) into the 1x1 conv weight ----
    scale = gamma.astype(f32) / jnp.sqrt(running_var.astype(f32) + eps)   # (D,)
    w_fold = conv_w[:, :, 0, 0].astype(f32) * scale[:, None]              # (D, Cin)
    shift = beta.astype(f32) - running_mean.astype(f32) * scale           # (D,)

    # ---- adaptive-avg-pool matrix with an all-zero cls column 0 ----
    h_idx = jnp.arange(HW) // W
    w_idx = jnp.arange(HW) % W
    blk = (h_idx // kh) * p + (w_idx // kw)                               # (HW,)
    # pool[s, 1 + r] = 1/(kh*kw) iff spatial s lies in window r; col 0 = 0.
    # (1/(kh*kw) is exact in bf16 only for power-of-two windows.)
    pool = ((blk[:, None] + 1) == jnp.arange(T)[None, :]).astype(f32) / float(kh * kw)

    # ---- fold cls token + positional embedding into one (T, D) constant ----
    tokpos = position.reshape(T, D).astype(f32)
    tokpos = tokpos.at[0, :].add(cls_token.reshape(D).astype(f32))

    w_fold = w_fold.astype(compute_dtype)
    pool = pool.astype(compute_dtype)

    # ---- Cin reduction blocking (keeps the x tile small in VMEM) ----
    if block_cin is None:
        block_cin = Cin if Cin <= 256 else 256
    if Cin % block_cin != 0:          # keep it simple: fall back to one block
        block_cin = Cin
    n_k = Cin // block_cin

    if d_minor:
        kernel = _f2t_kernel_dminor
        w_in = w_fold.T                                               # (Cin, D)
        w_spec = pl.BlockSpec((block_cin, D), lambda b, k: (k, 0))
        shift_in = shift.reshape(1, D)
        tokpos_in = tokpos                                            # (T, D)
        out_shape = (B, T, D)
        out_spec = pl.BlockSpec((None, T, D), lambda b, k: (b, 0, 0))
        acc_shape = (HW, D)
    else:
        kernel = _f2t_kernel_dmajor
        w_in = w_fold                                                 # (D, Cin)
        w_spec = pl.BlockSpec((D, block_cin), lambda b, k: (0, k))
        shift_in = shift.reshape(D, 1)
        tokpos_in = tokpos.T                                          # (D, T)
        out_shape = (B, D, T)
        out_spec = pl.BlockSpec((None, D, T), lambda b, k: (b, 0, 0))
        acc_shape = (D, HW)

    # ---- size the scoped-VMEM request from the actual per-step footprint ----
    isz = jnp.dtype(compute_dtype).itemsize
    step_bytes = (2 * block_cin * HW * isz          # double-buffered x tile
                  + 2 * D * block_cin * isz         # weight tile
                  + 2 * HW * T * isz                # pool matrix
                  + 4 * T * D * 4 + 2 * D * 4       # tokpos + output + shift
                  + acc_shape[0] * acc_shape[1] * 4)  # f32 accumulator
    vmem_limit = int(min(64 * 2 ** 20, max(4 * 2 ** 20, 2 * step_bytes)))

    out = pl.pallas_call(
        kernel,
        out_shape=jax.ShapeDtypeStruct(out_shape, jnp.float32),
        grid_spec=pltpu.PrefetchScalarGridSpec(
            num_scalar_prefetch=0,
            grid=(B, n_k),                               # batch x Cin-reduction
            in_specs=[
                pl.BlockSpec((None, block_cin, HW), lambda b, k: (b, k, 0)),  # x
                w_spec,                                                       # fused conv*BN weight
                pl.BlockSpec(shift_in.shape, lambda b, k: (0, 0)),            # BN shift
                pl.BlockSpec((HW, T), lambda b, k: (0, 0)),                   # pool (+ zero cls col)
                pl.BlockSpec(tokpos_in.shape, lambda b, k: (0, 0)),           # cls+pos constant
            ],
            out_specs=out_spec,
            scratch_shapes=[pltpu.VMEM(acc_shape, jnp.float32)],
        ),
        compiler_params=pltpu.CompilerParams(
            dimension_semantics=("parallel", "arbitrary"),
            vmem_limit_bytes=vmem_limit),
    )(x, w_in, shift_in, pool, tokpos_in)

    if not d_minor:
        # Tiny per-element (D, T) -> (T, D); only taken when D < 128.
        out = jnp.transpose(out, (0, 2, 1))
    return out


def f2t_reference(x_nchw, conv_w, gamma, beta, running_mean, running_var,
                  cls_token, position, p, eps=1e-5):
    """Pure-JAX reference mirroring the PyTorch F2T forward (eval-mode BN)."""
    B, Cin, H, W = x_nchw.shape
    D = conv_w.shape[0]
    kh, kw = H // p, W // p
    x = x_nchw.astype(jnp.float32)
    y = jnp.einsum('bchw,dc->bdhw', x, conv_w[:, :, 0, 0])
    scale = gamma / jnp.sqrt(running_var + eps)
    y = y * scale[None, :, None, None] + (beta - running_mean * scale)[None, :, None, None]
    y = jnp.maximum(y, 0.0)
    y = y.reshape(B, D, p, kh, p, kw).mean(axis=(3, 5))               # (B, D, p, p)
    y = y.reshape(B, D, p * p).transpose(0, 2, 1)                     # (B, p*p, D)
    cls = jnp.broadcast_to(cls_token.reshape(1, 1, D), (B, 1, D))
    tok = jnp.concatenate([cls, y], axis=1)
    return tok + position.reshape(1, p * p + 1, D)


if __name__ == "__main__":
    B, Cin, H, W = 2, 4, 16, 16
    D = 32            # embedding_dimension
    p = 4             # pooled grid -> 16 spatial tokens + 1 cls = 17

    key = jax.random.PRNGKey(0)
    k_x, k_w, k_g, k_b, k_m, k_v, k_cls, k_pos = jax.random.split(key, 8)

    x = jax.random.normal(k_x, (B, Cin, H, W), dtype=jnp.float32)
    conv_w = jax.random.normal(k_w, (D, Cin, 1, 1), dtype=jnp.float32) * 0.1
    gamma = 1.0 + 0.1 * jax.random.normal(k_g, (D,), dtype=jnp.float32)
    beta = 0.1 * jax.random.normal(k_b, (D,), dtype=jnp.float32)
    running_mean = 0.1 * jax.random.normal(k_m, (D,), dtype=jnp.float32)
    running_var = 1.0 + 0.1 * jax.random.uniform(k_v, (D,), dtype=jnp.float32)
    cls_token = jax.random.normal(k_cls, (1, 1, D), dtype=jnp.float32)
    position = jax.random.normal(k_pos, (1, p * p + 1, D), dtype=jnp.float32)

    args = (conv_w, gamma, beta, running_mean, running_var, cls_token, position, p)
    ref = f2t_reference(x, *args)

    # 1) f32, layout auto-selected (D=32 < 128 -> D-major compute, HW on lanes).
    out = jax.block_until_ready(f2t_forward(x, *args))
    assert out.shape == (B, p * p + 1, D), out.shape
    assert jnp.allclose(out, ref, atol=1e-4, rtol=1e-4), "f32 auto-layout mismatch"

    # 2) f32, forced D-minor layout (the lane-dense-output path used when D >= 128).
    out_dm = jax.block_until_ready(f2t_forward(x, *args, d_minor=True))
    assert jnp.allclose(out_dm, ref, atol=1e-4, rtol=1e-4), "f32 D-minor mismatch"

    # 3) bf16 fast path: x already bf16 "in HBM" (no wrapper cast round trip).
    out_bf = jax.block_until_ready(f2t_forward(x.astype(jnp.bfloat16), *args))
    assert jnp.allclose(out_bf, ref, atol=5e-2, rtol=5e-2), "bf16 mismatch"

    # 4) Multi-step Cin reduction (accumulator path): Cin=16 split into 2 blocks.
    Cin2 = 16
    k_x2, k_w2 = jax.random.split(jax.random.PRNGKey(1), 2)
    x2 = jax.random.normal(k_x2, (B, Cin2, H, W), dtype=jnp.float32)
    conv_w2 = jax.random.normal(k_w2, (D, Cin2, 1, 1), dtype=jnp.float32) * 0.1
    args2 = (conv_w2, gamma, beta, running_mean, running_var, cls_token, position, p)
    ref2 = f2t_reference(x2, *args2)
    out2 = jax.block_until_ready(
        f2t_forward(x2, *args2, d_minor=True, block_cin=8))
    assert jnp.allclose(out2, ref2, atol=1e-4, rtol=1e-4), "Cin-reduction mismatch"

    print("KERNEL_OK")
</pallas_src>

<mosaic_0001>
module attributes {stable_mosaic.version = 11 : i64} {
  func.func @_f2t_kernel_dmajor(%arg0: i32, %arg1: i32, %arg2: memref<1x4x256xf32, #tpu.memory_space<vmem>>, %arg3: memref<32x4xf32, #tpu.memory_space<vmem>>, %arg4: memref<32x1xf32, #tpu.memory_space<vmem>>, %arg5: memref<256x17xf32, #tpu.memory_space<vmem>>, %arg6: memref<32x17xf32, #tpu.memory_space<vmem>>, %arg7: memref<1x32x17xf32, #tpu.memory_space<vmem>>, %arg8: memref<32x256xf32, #tpu.memory_space<vmem>>) attributes {dimension_semantics = [#tpu.dimension_semantics<parallel>, #tpu.dimension_semantics<arbitrary>], iteration_bounds = array<i64: 2, 1>, scalar_prefetch = 0 : i64, scratch_operands = 1 : i64, tpu.core_type = #tpu.core_type<tc>, window_params = [{transform_indices = @transform_0, window_bounds = array<i64: 1, 4, 256>}, {transform_indices = @transform_1, window_bounds = array<i64: 32, 4>}, {pipeline_mode = #tpu.pipeline_mode<synchronous>, transform_indices = @transform_2, window_bounds = array<i64: 32, 1>}, {pipeline_mode = #tpu.pipeline_mode<synchronous>, transform_indices = @transform_3, window_bounds = array<i64: 256, 17>}, {pipeline_mode = #tpu.pipeline_mode<synchronous>, transform_indices = @transform_4, window_bounds = array<i64: 32, 17>}, {transform_indices = @transform_5, window_bounds = array<i64: 1, 32, 17>}]} {
    %c0_i32 = arith.constant 0 : i32
    %0 = arith.cmpi eq, %arg1, %c0_i32 : i32
    %1 = arith.extui %0 : i1 to i32
    %c0_i32_0 = arith.constant 0 : i32
    %2 = arith.cmpi ne, %1, %c0_i32_0 : i32
    scf.if %2 {
      %cst_11 = arith.constant 0.000000e+00 : f32
      %13 = vector.broadcast %cst_11 : f32 to vector<32x256xf32>
      %c0_12 = arith.constant 0 : index
      %c0_13 = arith.constant 0 : index
      %14 = vector.load %arg8[%c0_12, %c0_13] : memref<32x256xf32, #tpu.memory_space<vmem>>, vector<32x256xf32>
      tpu.vector_store %arg8[%c0_12, %c0_13], %13 {strides = array<i32>} : memref<32x256xf32, #tpu.memory_space<vmem>>, vector<32x256xf32>,
    } else {
    }
    %c0 = arith.constant 0 : index
    %c0_1 = arith.constant 0 : index
    %3 = vector.load %arg8[%c0, %c0_1] : memref<32x256xf32, #tpu.memory_space<vmem>>, vector<32x256xf32>
    %c0_2 = arith.constant 0 : index
    %c0_3 = arith.constant 0 : index
    %4 = vector.load %arg3[%c0_2, %c0_3] : memref<32x4xf32, #tpu.memory_space<vmem>>, vector<32x4xf32>
    %c0_4 = arith.constant 0 : index
    %c0_5 = arith.constant 0 : index
    %c0_6 = arith.constant 0 : index
    %5 = vector.load %arg2[%c0_4, %c0_5, %c0_6] : memref<1x4x256xf32, #tpu.memory_space<vmem>>, vector<1x4x256xf32>
    %6 = vector.shape_cast %5 : vector<1x4x256xf32> to vector<4x256xf32>
    %cst = arith.constant dense<0.000000e+00> : vector<32x256xf32>
    %7 = tpu.matmul %4, %6, %cst {dimension_numbers = #tpu.dot_dimension_numbers<[1], [0], [0], [1], [0, 0, 1, 1], [], []>} : vector<32x4xf32>, vector<4x256xf32>, vector<32x256xf32> -> vector<32x256xf32>
    %8 = arith.addf %3, %7 : vector<32x256xf32>
    %c0_7 = arith.constant 0 : index
    %c0_8 = arith.constant 0 : index
    %9 = vector.load %arg8[%c0_7, %c0_8] : memref<32x256xf32, #tpu.memory_space<vmem>>, vector<32x256xf32>
    tpu.vector_store %arg8[%c0_7, %c0_8], %8 {strides = array<i32>} : memref<32x256xf32, #tpu.memory_space<vmem>>, vector<32x256xf32>,
    %c0_i32_9 = arith.constant 0 : i32
    %10 = arith.cmpi eq, %arg1, %c0_i32_9 : i32
    %11 = arith.extui %10 : i1 to i32
    %c0_i32_10 = arith.constant 0 : i32
    %12 = arith.cmpi ne, %11, %c0_i32_10 : i32
    scf.if %12 {
      %c0_11 = arith.constant 0 : index
      %c0_12 = arith.constant 0 : index
      %13 = vector.load %arg5[%c0_11, %c0_12] : memref<256x17xf32, #tpu.memory_space<vmem>>, vector<256x17xf32>
      %c0_13 = arith.constant 0 : index
      %c0_14 = arith.constant 0 : index
      %14 = vector.load %arg8[%c0_13, %c0_14] : memref<32x256xf32, #tpu.memory_space<vmem>>, vector<32x256xf32>
      %c0_15 = arith.constant 0 : index
      %c0_16 = arith.constant 0 : index
      %15 = vector.load %arg4[%c0_15, %c0_16] : memref<32x1xf32, #tpu.memory_space<vmem>>, vector<32x1xf32>
      %16 = vector.broadcast %15 : vector<32x1xf32> to vector<32x256xf32>
      %17 = arith.addf %14, %16 : vector<32x256xf32>
      %cst_17 = arith.constant 0.000000e+00 : f32
      %18 = vector.broadcast %cst_17 : f32 to vector<32x256xf32>
      %19 = arith.maximumf %17, %18 : vector<32x256xf32>
      %cst_18 = arith.constant dense<0.000000e+00> : vector<32x17xf32>
      %20 = tpu.matmul %19, %13, %cst_18 {dimension_numbers = #tpu.dot_dimension_numbers<[1], [0], [0], [1], [0, 0, 1, 1], [], []>} : vector<32x256xf32>, vector<256x17xf32>, vector<32x17xf32> -> vector<32x17xf32>
      %c0_19 = arith.constant 0 : index
      %c0_20 = arith.constant 0 : index
      %21 = vector.load %arg6[%c0_19, %c0_20] : memref<32x17xf32, #tpu.memory_space<vmem>>, vector<32x17xf32>
      %22 = arith.addf %20, %21 : vector<32x17xf32>
      %c0_21 = arith.constant 0 : index
      %c0_22 = arith.constant 0 : index
      %c0_23 = arith.constant 0 : index
      %23 = vector.load %arg7[%c0_21, %c0_22, %c0_23] : memref<1x32x17xf32, #tpu.memory_space<vmem>>, vector<1x32x17xf32>
      %24 = vector.shape_cast %23 : vector<1x32x17xf32> to vector<32x17xf32>
      %25 = vector.shape_cast %22 : vector<32x17xf32> to vector<1x32x17xf32>
      tpu.vector_store %arg7[%c0_21, %c0_22, %c0_23], %25 {strides = array<i32>} : memref<1x32x17xf32, #tpu.memory_space<vmem>>, vector<1x32x17xf32>,
    } else {
    }
    return
  }
  func.func @transform_0(%arg0: i32, %arg1: i32) -> (i32, i32, i32) {
    %c0_i32 = arith.constant 0 : i32
    %c0_i32_0 = arith.constant 0 : i32
    return %arg0, %arg1, %c0_i32 : i32, i32, i32
  }
  func.func @transform_1(%arg0: i32, %arg1: i32) -> (i32, i32) {
    %c0_i32 = arith.constant 0 : i32
    %c0_i32_0 = arith.constant 0 : i32
    return %c0_i32, %arg1 : i32, i32
  }
  func.func @transform_2(%arg0: i32, %arg1: i32) -> (i32, i32) {
    %c0_i32 = arith.constant 0 : i32
    %c0_i32_0 = arith.constant 0 : i32
    %c0_i32_1 = arith.constant 0 : i32
    return %c0_i32, %c0_i32_0 : i32, i32
  }
  func.func @transform_3(%arg0: i32, %arg1: i32) -> (i32, i32) {
    %c0_i32 = arith.constant 0 : i32
    %c0_i32_0 = arith.constant 0 : i32
    %c0_i32_1 = arith.constant 0 : i32
    return %c0_i32, %c0_i32_0 : i32, i32
  }
  func.func @transform_4(%arg0: i32, %arg1: i32) -> (i32, i32) {
    %c0_i32 = arith.constant 0 : i32
    %c0_i32_0 = arith.constant 0 : i32
    %c0_i32_1 = arith.constant 0 : i32
    return %c0_i32, %c0_i32_0 : i32, i32
  }
  func.func @transform_5(%arg0: i32, %arg1: i32) -> (i32, i32, i32) {
    %c0_i32 = arith.constant 0 : i32
    %c0_i32_0 = arith.constant 0 : i32
    %c0_i32_1 = arith.constant 0 : i32
    return %arg0, %c0_i32, %c0_i32_0 : i32, i32, i32
  }
}

</mosaic_0001>

<llo_original>
// kernel: tpu_custom_call.1
$region0: #{tpu_custom_call.1}
  #allocation0 [shape = 'u32[]', space=smem, size = 0x4, offset = 0x4, fixed_abs, tag = 'smem constant byte address 0x4 - core index']
  #allocation1 [shape = 'u32[144,128]{1,0:T(1,128)}', space=vmem, size = 0x12000, scoped, tag = 'internal scratch']
  #allocation2 [shape = 'f32[32,256]{1,0:T(8,128)}', space=vmem, size = 0x8000, scoped, tag = 'scratch operand']
  %s0 = inlined_call_operand.vmem [shape: f32[2,4,256], index: 0, kind: input, shape index: {}]
  %s1 = inlined_call_operand.vmem [shape: f32[32,4], index: 1, kind: input, shape index: {}]
  %s2 = inlined_call_operand.vmem [shape: f32[32,1], index: 2, kind: input, shape index: {}]
  %s3 = inlined_call_operand.vmem [shape: f32[256,17], index: 3, kind: input, shape index: {}]
  %s4 = inlined_call_operand.vmem [shape: f32[32,17], index: 4, kind: input, shape index: {}]
  %s5 = inlined_call_operand.vmem [shape: f32[2,32,17], index: 5, kind: output, shape index: {}]
  %s6 = sld [smem:[#allocation0]]
  $region61: #{tpu_custom_call.1} parent=0
    _
  %s8 = ssub.s32 1, %s6
  %s9 = scalar_select 0, %s8, %s6
  loop: start=0, step=1, limit=4
  $region2: #{tpu_custom_call.1} parent=0 // loop_pre_header
    _
  $region3: #{tpu_custom_call.1} parent=0 // loop_header
    %s11 = sphi 0, %s15
    %p12 = scmp.ge.s32.totalorder %s11, 4
    %s18 = sphi 0, %s30
    %s19 = sphi 0, %s26
    %s20 = sphi 0, %s18
    %s21 = sphi 0, %s19
    %s22 = sphi 0, %s20
    %s23 = sphi 0, %s21
    %s35 = sphi 0, %s37
    %s38 = sphi 0, %s35
    %s39 = sphi 0, %s38
    %s55 = sphi 0, %s39
    %s61 = sphi 0, %s63
    %s64 = sphi 0, %s61
    %s65 = sphi 0, %s64
    %s81 = sphi 0, %s65
    %s85 = sphi 0, %s85
    %s87 = sphi 0, %s85
    %s88 = sphi 0, %s87
    %s102 = sphi 0, %s88
    %s106 = sphi 0, %s106
    %s108 = sphi 0, %s106
    %s109 = sphi 0, %s108
    %s123 = sphi 0, %s109
    %s127 = sphi 0, %s127
    %s129 = sphi 0, %s127
    %s130 = sphi 0, %s129
    %s144 = sphi 0, %s130
    %s150 = sphi 0, %s152
    %s153 = sphi 0, %s150
    %s154 = sphi 0, %s153
    %s170 = sphi 0, %s154
  $region4: #{tpu_custom_call.1} parent=0 // loop_header_branch
    %14 = sbr.rel (%p12) target = $region8
  $region5: #{tpu_custom_call.1} parent=0 // loop_body
    %s16 = ssub.s32 %s11, 1
    %s17 = ssub.s32 %s11, 2
    %s24 = sadd.s32 1, %s19
    %p25 = scmp.ge.s32.totalorder %s24, 1
    %s26 = scalar_select %p25, 0, %s24
    %s27 = sadd.s32 1, %s18
    %s28 = scalar_select %p25, %s27, %s18
    %p29 = scmp.ge.s32.totalorder %s28, 2
    %s30 = scalar_select %p29, 0, %s28
    %s31 = ssub.s32 %s18, %s30
    %s32 = ssub.s32 %s19, %s26
    %s33 = sor.u32 %s31, %s32
    %p34 = scmp.eq.s32.totalorder %s33, 0
    %s36 = sadd.s32 %s35, 1
    %s37 = scalar_select %p34, %s35, %s36
    %p40 = pneg %p34
    %p41 = scmp.eq.s32.totalorder %s11, 1
    %p42 = por %p40, %p41
    %p43 = scmp.ne.s32.totalorder %s35, %s38
    %p44 = scmp.eq.s32.totalorder %s11, 0
    %p45 = por %p43, %p44
    %p46 = scmp.ne.s32.totalorder %s35, %s38
    %p47 = scmp.eq.s32.totalorder %s16, 1
    %p48 = por %p46, %p47
    %p49 = scmp.ne.s32.totalorder %s38, %s39
    %p50 = scmp.eq.s32.totalorder %s16, 0
    %p51 = por %p49, %p50
    %p52 = scmp.ne.s32.totalorder %s38, %s39
    %p53 = scmp.eq.s32.totalorder %s17, 1
    %p54 = por %p52, %p53
    %p56 = scmp.ne.s32.totalorder %s39, %s55
    %p57 = scmp.eq.s32.totalorder %s17, 0
    %p58 = por %p56, %p57
    %s59 = ssub.s32 %s19, %s26
    %p60 = scmp.eq.s32.totalorder %s59, 0
    %s62 = sadd.s32 %s61, 1
    %s63 = scalar_select %p60, %s61, %s62
    %p66 = pneg %p60
    %p67 = scmp.eq.s32.totalorder %s11, 1
    %p68 = por %p66, %p67
    %p69 = scmp.ne.s32.totalorder %s61, %s64
    %p70 = scmp.eq.s32.totalorder %s11, 0
    %p71 = por %p69, %p70
    %p72 = scmp.ne.s32.totalorder %s61, %s64
    %p73 = scmp.eq.s32.totalorder %s16, 1
    %p74 = por %p72, %p73
    %p75 = scmp.ne.s32.totalorder %s64, %s65
    %p76 = scmp.eq.s32.totalorder %s16, 0
    %p77 = por %p75, %p76
    %p78 = scmp.ne.s32.totalorder %s64, %s65
    %p79 = scmp.eq.s32.totalorder %s17, 1
    %p80 = por %p78, %p79
    %p82 = scmp.ne.s32.totalorder %s65, %s81
    %p83 = scmp.eq.s32.totalorder %s17, 0
    %p84 = por %p82, %p83
    %s86 = sadd.s32 %s85, 1
    %p89 = scmp.eq.s32.totalorder %s11, 1
    %p90 = scmp.ne.s32.totalorder %s85, %s87
    %p91 = scmp.eq.s32.totalorder %s11, 0
    %p92 = por %p90, %p91
    %p93 = scmp.ne.s32.totalorder %s85, %s87
    %p94 = scmp.eq.s32.totalorder %s16, 1
    %p95 = por %p93, %p94
    %p96 = scmp.ne.s32.totalorder %s87, %s88
    %p97 = scmp.eq.s32.totalorder %s16, 0
    %p98 = por %p96, %p97
    %p99 = scmp.ne.s32.totalorder %s87, %s88
    %p100 = scmp.eq.s32.totalorder %s17, 1
    %p101 = por %p99, %p100
    %p103 = scmp.ne.s32.totalorder %s88, %s102
    %p104 = scmp.eq.s32.totalorder %s17, 0
    %p105 = por %p103, %p104
    %s107 = sadd.s32 %s106, 1
    %p110 = scmp.eq.s32.totalorder %s11, 1
    %p111 = scmp.ne.s32.totalorder %s106, %s108
    %p112 = scmp.eq.s32.totalorder %s11, 0
    %p113 = por %p111, %p112
    %p114 = scmp.ne.s32.totalorder %s106, %s108
    %p115 = scmp.eq.s32.totalorder %s16, 1
    %p116 = por %p114, %p115
    %p117 = scmp.ne.s32.totalorder %s108, %s109
    %p118 = scmp.eq.s32.totalorder %s16, 0
    %p119 = por %p117, %p118
    %p120 = scmp.ne.s32.totalorder %s108, %s109
    %p121 = scmp.eq.s32.totalorder %s17, 1
    %p122 = por %p120, %p121
    %p124 = scmp.ne.s32.totalorder %s109, %s123
    %p125 = scmp.eq.s32.totalorder %s17, 0
    %p126 = por %p124, %p125
    %s128 = sadd.s32 %s127, 1
    %p131 = scmp.eq.s32.totalorder %s11, 1
    %p132 = scmp.ne.s32.totalorder %s127, %s129
    %p133 = scmp.eq.s32.totalorder %s11, 0
    %p134 = por %p132, %p133
    %p135 = scmp.ne.s32.totalorder %s127, %s129
    %p136 = scmp.eq.s32.totalorder %s16, 1
    %p137 = por %p135, %p136
    %p138 = scmp.ne.s32.totalorder %s129, %s130
    %p139 = scmp.eq.s32.totalorder %s16, 0
    %p140 = por %p138, %p139
    %p141 = scmp.ne.s32.totalorder %s129, %s130
    %p142 = scmp.eq.s32.totalorder %s17, 1
    %p143 = por %p141, %p142
    %p145 = scmp.ne.s32.totalorder %s130, %s144
    %p146 = scmp.eq.s32.totalorder %s17, 0
    %p147 = por %p145, %p146
    %s148 = ssub.s32 %s18, %s30
    %p149 = scmp.eq.s32.totalorder %s148, 0
    %s151 = sadd.s32 %s150, 1
    %s152 = scalar_select %p149, %s150, %s151
    %p155 = pneg %p149
    %p156 = scmp.eq.s32.totalorder %s11, 1
    %p157 = por %p155, %p156
    %p158 = scmp.ne.s32.totalorder %s150, %s153
    %p159 = scmp.eq.s32.totalorder %s11, 0
    %p160 = por %p158, %p159
    %p161 = scmp.ne.s32.totalorder %s150, %s153
    %p162 = scmp.eq.s32.totalorder %s16, 1
    %p163 = por %p161, %p162
    %p164 = scmp.ne.s32.totalorder %s153, %s154
    %p165 = scmp.eq.s32.totalorder %s16, 0
    %p166 = por %p164, %p165
    %p167 = scmp.ne.s32.totalorder %s153, %s154
    %p168 = scmp.eq.s32.totalorder %s17, 1
    %p169 = por %p167, %p168
    %p171 = scmp.ne.s32.totalorder %s154, %s170
    %p172 = scmp.eq.s32.totalorder %s17, 0
    %p173 = por %p171, %p172
    %p174 = scmp.le.s32.totalorder 1, %s11
    %p175 = scmp.lt.s32.totalorder %s11, 3
    %p176 = pnand %p174, %p175
    %p177 = pneg %p176
    // Predicated region
    $region9: #{tpu_custom_call.1} parent=5 // pred_check
      _
    $region10: #{tpu_custom_call.1} parent=5 // pred_check_branch
      %179 = sbr.rel (%p176) target = $region12
    $region11: #{tpu_custom_call.1} parent=5 // pred_region
      %s180 = ssub.s32 %s11, 1
      // Predicated region
      $region13: #{tpu_custom_call.1} parent=11 // pred_check
        %p181 = pneg %p77
      $region14: #{tpu_custom_call.1} parent=11 // pred_check_branch
        %183 = sbr.rel (%p181) target = $region16
      $region15: #{tpu_custom_call.1} parent=11 // pred_region
        %p184 = scmp.lt.s32.totalorder %s21, 0
        %s185 = scalar_select %p184, %s21, 0
        %s186 = smul.addr %s185, 8
        %s187 = scalar_lea.vmem %s1, %s186
      $region16: #{tpu_custom_call.1} parent=11 // pred_fallthru
        _
      // Predicated region
      $region17: #{tpu_custom_call.1} parent=11 // pred_check
        %p188 = pneg %p98
      $region18: #{tpu_custom_call.1} parent=11 // pred_check_branch
        %190 = sbr.rel (%p188) target = $region20
      $region19: #{tpu_custom_call.1} parent=11 // pred_region
        _
      $region20: #{tpu_custom_call.1} parent=11 // pred_fallthru
        _
      // Predicated region
      $region21: #{tpu_custom_call.1} parent=11 // pred_check
        %p191 = pneg %p119
      $region22: #{tpu_custom_call.1} parent=11 // pred_check_branch
        %193 = sbr.rel (%p191) target = $region24
      $region23: #{tpu_custom_call.1} parent=11 // pred_region
        _
      $region24: #{tpu_custom_call.1} parent=11 // pred_fallthru
        _
      // Predicated region
      $region25: #{tpu_custom_call.1} parent=11 // pred_check
        %p194 = pneg %p140
      $region26: #{tpu_custom_call.1} parent=11 // pred_check_branch
        %196 = sbr.rel (%p194) target = $region28
      $region27: #{tpu_custom_call.1} parent=11 // pred_region
        _
      $region28: #{tpu_custom_call.1} parent=11 // pred_fallthru
        _
    $region12: #{tpu_custom_call.1} parent=5 // pred_fallthru
      _
    %p197 = scmp.lt.s32.totalorder %s11, 2
    // Predicated region
    $region29: #{tpu_custom_call.1} parent=5 // pred_check
      %p198 = pneg %p197
    $region30: #{tpu_custom_call.1} parent=5 // pred_check_branch
      %200 = sbr.rel (%p198) target = $region32
    $region31: #{tpu_custom_call.1} parent=5 // pred_region
      // Predicated region
      $region33: #{tpu_custom_call.1} parent=31 // pred_check
        %p201 = pneg %p45
      $region34: #{tpu_custom_call.1} parent=31 // pred_check_branch
        %203 = sbr.rel (%p201) target = $region36
      $region35: #{tpu_custom_call.1} parent=31 // pred_region
        %p204 = scmp.lt.s32.totalorder %s18, 1
        %s205 = scalar_select %p204, %s18, 1
        %p206 = scmp.lt.s32.totalorder %s19, 0
        %s207 = scalar_select %p206, %s19, 0
        %s208 = smul.addr %s207, 2
        %s209 = smul.addr %s205, 2
        %s210 = sadd.s32 %s208, %s209
        %s211 = smul.addr %s210, 4
        %s212 = scalar_lea.vmem %s0, %s211
      $region36: #{tpu_custom_call.1} parent=31 // pred_fallthru
        _
    $region32: #{tpu_custom_call.1} parent=5 // pred_fallthru
      _
    %p213 = scmp.le.s32.totalorder 1, %s11
    %p214 = scmp.lt.s32.totalorder %s11, 3
    %p215 = pnand %p213, %p214
    %p216 = pneg %p215
    // Predicated region
    $region37: #{tpu_custom_call.1} parent=5 // pred_check
      _
    $region38: #{tpu_custom_call.1} parent=5 // pred_check_branch
      %218 = sbr.rel (%p215) target = $region40
    $region39: #{tpu_custom_call.1} parent=5 // pred_region
      %s219 = ssub.s32 %s11, 1
      %p220 = scmp.lt.s32.totalorder %s20, 1
      %s221 = scalar_select %p220, %s20, 1
      %p222 = scmp.lt.s32.totalorder %s21, 0
      %s223 = scalar_select %p222, %s21, 0
      %s224 = smul.addr %s223, 2
      %s225 = smul.addr %s221, 2
      %s226 = sadd.s32 %s224, %s225
      %s227 = smul.addr %s226, 4
      %s228 = scalar_lea.vmem %s0, %s227
      %p229 = pneg %p51
      %p230 = pneg %p48
      %p231 = scmp.lt.s32.totalorder %s21, 0
      %s232 = scalar_select %p231, %s21, 0
      %s233 = smul.addr %s232, 8
      %s234 = scalar_lea.vmem %s1, %s233
      %p235 = pneg %p77
      %p236 = pneg %p74
      %p237 = pneg %p98
      %p238 = pneg %p95
      %p239 = pneg %p119
      %p240 = pneg %p116
      %p241 = pneg %p140
      %p242 = pneg %p137
      %p243 = pneg %p166
      %p244 = pneg %p163
      %p245 = scmp.lt.s32.totalorder %s20, 1
      %s246 = scalar_select %p245, %s20, 1
      %s247 = smul.addr %s246, 4
      %s248 = smul.addr %s247, 8
      %s249 = scalar_lea.vmem %s5, %s248
      %p250 = scmp.lt.s32.totalorder %s20, 1
      %s251 = scalar_select %p250, %s20, 1
      %p252 = scmp.lt.s32.totalorder %s21, 0
      %s253 = scalar_select %p252, %s21, 0
      %s254 = smul.addr %s253, 2
      %s255 = smul.addr %s251, 2
      %s256 = sadd.s32 %s254, %s255
      %s257 = smul.addr %s256, 4
      %s258 = scalar_lea.vmem %s0, %s257
      %p259 = scmp.lt.s32.totalorder %s21, 0
      %s260 = scalar_select %p259, %s21, 0
      %s261 = smul.addr %s260, 8
      %s262 = scalar_lea.vmem %s1, %s261
      %p263 = scmp.lt.s32.totalorder %s20, 1
      %s264 = scalar_select %p263, %s20, 1
      %s265 = smul.addr %s264, 4
      %s266 = smul.addr %s265, 8
      %s267 = scalar_lea.vmem %s5, %s266
      %p268 = scmp.eq.s32.totalorder %s21, 0
      // Predicated region
      $region41: #{tpu_custom_call.1} parent=39 // pred_check
        %p269 = pneg %p268
      $region42: #{tpu_custom_call.1} parent=39 // pred_check_branch
        %271 = sbr.rel (%p269) target = $region44
      $region43: #{tpu_custom_call.1} parent=39 // pred_region
        %272 = vst [vmem:[#allocation2] sm:$0xff] 0.0
        %273 = vst [vmem:[#allocation2 + $0x8] sm:$0xff] 0.0
        %274 = vst [vmem:[#allocation2 + $0x10] sm:$0xff] 0.0
        %275 = vst [vmem:[#allocation2 + $0x18] sm:$0xff] 0.0
        %276 = vst [vmem:[#allocation2 + $0x20] sm:$0xff] 0.0
        %277 = vst [vmem:[#allocation2 + $0x28] sm:$0xff] 0.0
        %278 = vst [vmem:[#allocation2 + $0x30] sm:$0xff] 0.0
        %279 = vst [vmem:[#allocation2 + $0x38] sm:$0xff] 0.0
      $region44: #{tpu_custom_call.1} parent=39 // pred_fallthru
        _
      %v280 = vld [vmem:[#allocation2] sm:$0xff]
      %v281 = vld [vmem:[#allocation2 + $0x8] sm:$0xff]
      %v282 = vld [vmem:[#allocation2 + $0x10] sm:$0xff]
      %v283 = vld [vmem:[#allocation2 + $0x18] sm:$0xff]
      %v284 = vld [vmem:[#allocation2 + $0x20] sm:$0xff]
      %v285 = vld [vmem:[#allocation2 + $0x28] sm:$0xff]
      %v286 = vld [vmem:[#allocation2 + $0x30] sm:$0xff]
      %v287 = vld [vmem:[#allocation2 + $0x38] sm:$0xff]
      %v288 = vld [vmem:[%s262] sm:$0xff]
      %v289 = vld [vmem:[%s262 + $0x8] sm:$0xff]
      %v290 = vld [vmem:[%s262 + $0x10] sm:$0xff]
      %v291 = vld [vmem:[%s262 + $0x18] sm:$0xff]
      %v292 = vld [vmem:[%s258] sm:$0xff]
      %v294 = vcombine.high %v292, %v292
      %vm295 = vcmask 31744
      %v297 = vsel %vm295, %v288, 0
      %v300 = vsel %vm295, %v289, 0
      %v303 = vsel %vm295, %v290, 0
      %v306 = vsel %vm295, %v291, 0
      %vm308 = vcmask 1043456
      %v309 = vsel %vm308, %v292, 0
      %v311 = vsel %vm308, %v294, 0
      %313 = vmatprep.subr.mxu0 0.0
      %314 = vmatpush1.msra.mxu0 0.0
      %315 = vmatprep.subr.mxu0 0.0
      %316 = vmatpush1.msra.mxu0 0.0
      %317 = vmatprep.subr.mxu0 0.0
      %318 = vmatpush1.msra.mxu0 0.0
      %319 = vmatprep.subr.mxu0 0.0
      %320 = vmatpush1.msra.mxu0 0.0
      %321 = vmatprep.subr.mxu0 0.0
      %322 = vmatpush1.msra.mxu0 0.0
      %323 = vmatprep.subr.mxu0 0.0
      %324 = vmatpush1.msra.mxu0 0.0
      %325 = vmatprep.subr.mxu0 0.0
      %326 = vmatpush1.msra.mxu0 0.0
      %327 = vmatprep.subr.mxu0 0.0
      %328 = vmatpush1.msra.mxu0 0.0
      %329 = vmatprep.subr.mxu0 0.0
      %330 = vmatpush1.msra.mxu0 0.0
      %331 = vmatprep.subr.mxu0 0.0
      %332 = vmatpush1.msra.mxu0 0.0
      %333 = vmatprep.subr.mxu0 0.0
      %334 = vmatpush1.msra.mxu0 0.0
      %335 = vmatprep.subr.mxu0 0.0
      %336 = vmatpush1.msra.mxu0 0.0
      %337 = vmatprep.subr.mxu0 0.0
      %338 = vmatpush1.msra.mxu0 0.0
      %339 = vmatprep.subr.mxu0 0.0
      %340 = vmatpush1.msra.mxu0 0.0
      %341 = vmatprep.subr.mxu0 0.0
      %342 = vmatpush1.msra.mxu0 0.0
      %343 = vmatprep.subr.mxu0 %v311
      %344 = vmatpush1.msra.mxu0 %v309
      %345 = vmatprep.subr.mxu0 0.0
      %346 = vmatpush2.msra.mxu0 0.0
      %347 = vmatprep.subr.mxu0 0.0
      %348 = vmatpush2.msra.mxu0 0.0
      %349 = vmatprep.subr.mxu0 0.0
      %350 = vmatpush2.msra.mxu0 0.0
      %351 = vmatprep.subr.mxu0 0.0
      %352 = vmatpush2.msra.mxu0 0.0
      %353 = vmatprep.subr.mxu0 0.0
      %354 = vmatpush2.msra.mxu0 0.0
      %355 = vmatprep.subr.mxu0 0.0
      %356 = vmatpush2.msra.mxu0 0.0
      %357 = vmatprep.subr.mxu0 0.0
      %358 = vmatpush2.msra.mxu0 0.0
      %359 = vmatprep.subr.mxu0 0.0
      %360 = vmatpush2.msra.mxu0 0.0
      %361 = vmatprep.subr.mxu0 0.0
      %362 = vmatpush2.msra.mxu0 0.0
      %363 = vmatprep.subr.mxu0 0.0
      %364 = vmatpush2.msra.mxu0 0.0
      %365 = vmatprep.subr.mxu0 0.0
      %366 = vmatpush2.msra.mxu0 0.0
      %367 = vmatprep.subr.mxu0 0.0
      %368 = vmatpush2.msra.mxu0 0.0
      %369 = vmatprep.subr.mxu0 0.0
      %370 = vmatpush2.msra.mxu0 0.0
      %371 = vmatprep.subr.mxu0 0.0
      %372 = vmatpush2.msra.mxu0 0.0
      %373 = vmatprep.subr.mxu0 0.0
      %374 = vmatpush2.msra.mxu0 0.0
      %375 = vmatprep.subr.mxu0 0.0
      %376 = vmatpush2.msra.mxu0 0.0
      %377 = vmatprep.mubr.f32.mxu0 0.0
      %378 = vmatmul.mubr.f32.gmra.mxu0 %v297
      %v379 = vpop.f32.mrf.mxu0
      %v380 = vadd.f32 0.0, %v379
      %v381 = vpop.f32.mrf.mxu0
      %v382 = vadd.f32 0.0, %v381
      %383 = vmatprep.mubr.f32.mxu0 0.0
      %384 = vmatmul.mubr.f32.gmra.mxu0 %v300
      %v385 = vpop.f32.mrf.mxu0
      %v386 = vadd.f32 0.0, %v385
      %v387 = vpop.f32.mrf.mxu0
      %v388 = vadd.f32 0.0, %v387
      %389 = vmatprep.mubr.f32.mxu0 0.0
      %390 = vmatmul.mubr.f32.gmra.mxu0 %v303
      %v391 = vpop.f32.mrf.mxu0
      %v392 = vadd.f32 0.0, %v391
      %v393 = vpop.f32.mrf.mxu0
      %v394 = vadd.f32 0.0, %v393
      %395 = vmatprep.mubr.f32.mxu0 0.0
      %396 = vmatmul.mubr.f32.gmra.mxu0 %v306
      %v397 = vpop.f32.mrf.mxu0
      %v398 = vadd.f32 0.0, %v397
      %v399 = vpop.f32.mrf.mxu0
      %v400 = vadd.f32 0.0, %v399
      %401 = vdwg.mxu0
      %v402 = vadd.f32 %v280, %v380
      %v403 = vadd.f32 %v281, %v382
      %v404 = vadd.f32 %v282, %v386
      %v405 = vadd.f32 %v283, %v388
      %v406 = vadd.f32 %v284, %v392
      %v407 = vadd.f32 %v285, %v394
      %v408 = vadd.f32 %v286, %v398
      %v409 = vadd.f32 %v287, %v400
      %410 = vst [vmem:[#allocation2] sm:$0xff] %v402
      %411 = vst [vmem:[#allocation2 + $0x8] sm:$0xff] %v403
      %412 = vst [vmem:[#allocation2 + $0x10] sm:$0xff] %v404
      %413 = vst [vmem:[#allocation2 + $0x18] sm:$0xff] %v405
      %414 = vst [vmem:[#allocation2 + $0x20] sm:$0xff] %v406
      %415 = vst [vmem:[#allocation2 + $0x28] sm:$0xff] %v407
      %416 = vst [vmem:[#allocation2 + $0x30] sm:$0xff] %v408
      %417 = vst [vmem:[#allocation2 + $0x38] sm:$0xff] %v409
      // Predicated region
      $region45: #{tpu_custom_call.1} parent=39 // pred_check
        %p418 = pneg %p268
      $region46: #{tpu_custom_call.1} parent=39 // pred_check_branch
        %420 = sbr.rel (%p418) target = $region48
      $region47: #{tpu_custom_call.1} parent=39 // pred_region
        %v421 = vld [vmem:[%s3] sm:$0xff]
        %v422 = vld [vmem:[%s3 + $0x8] sm:$0xff]
        %v423 = vld [vmem:[%s3 + $0x10] sm:$0xff]
        %v424 = vld [vmem:[%s3 + $0x18] sm:$0xff]
        %v425 = vld [vmem:[%s3 + $0x20] sm:$0xff]
        %v426 = vld [vmem:[%s3 + $0x28] sm:$0xff]
        %v427 = vld [vmem:[%s3 + $0x30] sm:$0xff]
        %v428 = vld [vmem:[%s3 + $0x38] sm:$0xff]
        %v429 = vld [vmem:[%s3 + $0x40] sm:$0xff]
        %v430 = vld [vmem:[%s3 + $0x48] sm:$0xff]
        %v431 = vld [vmem:[%s3 + $0x50] sm:$0xff]
        %v432 = vld [vmem:[%s3 + $0x58] sm:$0xff]
        %v433 = vld [vmem:[%s3 + $0x60] sm:$0xff]
        %v434 = vld [vmem:[%s3 + $0x68] sm:$0xff]
        %v435 = vld [vmem:[%s3 + $0x70] sm:$0xff]
        %v436 = vld [vmem:[%s3 + $0x78] sm:$0xff]
        %v437 = vld [vmem:[%s3 + $0x80] sm:$0xff]
        %v438 = vld [vmem:[%s3 + $0x88] sm:$0xff]
        %v439 = vld [vmem:[%s3 + $0x90] sm:$0xff]
        %v440 = vld [vmem:[%s3 + $0x98] sm:$0xff]
        %v441 = vld [vmem:[%s3 + $0xa0] sm:$0xff]
        %v442 = vld [vmem:[%s3 + $0xa8] sm:$0xff]
        %v443 = vld [vmem:[%s3 + $0xb0] sm:$0xff]
        %v444 = vld [vmem:[%s3 + $0xb8] sm:$0xff]
        %v445 = vld [vmem:[%s3 + $0xc0] sm:$0xff]
        %v446 = vld [vmem:[%s3 + $0xc8] sm:$0xff]
        %v447 = vld [vmem:[%s3 + $0xd0] sm:$0xff]
        %v448 = vld [vmem:[%s3 + $0xd8] sm:$0xff]
        %v449 = vld [vmem:[%s3 + $0xe0] sm:$0xff]
        %v450 = vld [vmem:[%s3 + $0xe8] sm:$0xff]
        %v451 = vld [vmem:[%s3 + $0xf0] sm:$0xff]
        %v452 = vld [vmem:[%s3 + $0xf8] sm:$0xff]
        %v453 = vld [vmem:[#allocation2] sm:$0xff]
        %v454 = vld [vmem:[#allocation2 + $0x8] sm:$0xff]
        %v455 = vld [vmem:[#allocation2 + $0x10] sm:$0xff]
        %v456 = vld [vmem:[#allocation2 + $0x18] sm:$0xff]
        %v457 = vld [vmem:[#allocation2 + $0x20] sm:$0xff]
        %v458 = vld [vmem:[#allocation2 + $0x28] sm:$0xff]
        %v459 = vld [vmem:[#allocation2 + $0x30] sm:$0xff]
        %v460 = vld [vmem:[#allocation2 + $0x38] sm:$0xff]
        %v461 = vld [vmem:[%s2] sm:$0xff]
        %v462 = vld [vmem:[%s2 + $0x8] sm:$0xff]
        %v463 = vld [vmem:[%s2 + $0x10] sm:$0xff]
        %v464 = vld [vmem:[%s2 + $0x18] sm:$0xff]
        %466 = vset.pattern.permute.xlu0 0
        %467 = vperm.xlu0 %466, %v461
        %v468 = vpop.permute.xlu0 %467
        %471 = vset.pattern.permute.xlu0 0
        %472 = vperm.xlu0 %471, %v462
        %v473 = vpop.permute.xlu0 %472
        %476 = vset.pattern.permute.xlu0 0
        %477 = vperm.xlu0 %476, %v463
        %v478 = vpop.permute.xlu0 %477
        %481 = vset.pattern.permute.xlu0 0
        %482 = vperm.xlu0 %481, %v464
        %v483 = vpop.permute.xlu0 %482
        %v485 = vadd.f32 %v453, %v468
        %v486 = vadd.f32 %v454, %v468
        %v487 = vadd.f32 %v455, %v473
        %v488 = vadd.f32 %v456, %v473
        %v489 = vadd.f32 %v457, %v478
        %v490 = vadd.f32 %v458, %v478
        %v491 = vadd.f32 %v459, %v483
        %v492 = vadd.f32 %v460, %v483
        %v493 = vmax.f32 %v485, 0.0
        %v494 = vmax.f32 %v486, 0.0
        %v495 = vmax.f32 %v487, 0.0
        %v496 = vmax.f32 %v488, 0.0
        %v497 = vmax.f32 %v489, 0.0
        %v498 = vmax.f32 %v490, 0.0
        %v499 = vmax.f32 %v491, 0.0
        %v500 = vmax.f32 %v492, 0.0
        %v501 = vld [vmem:[%s4] sm:$0xff]
        %v502 = vld [vmem:[%s4 + $0x8] sm:$0xff]
        %v503 = vld [vmem:[%s4 + $0x10] sm:$0xff]
        %v504 = vld [vmem:[%s4 + $0x18] sm:$0xff]
        %505 = vmatprep.subr.mxu0 0.0
        %506 = vmatpush1.msra.mxu0 %v436
        %507 = vmatprep.subr.mxu0 0.0
        %508 = vmatpush1.msra.mxu0 %v435
        %509 = vmatprep.subr.mxu0 0.0
        %510 = vmatpush1.msra.mxu0 %v434
        %511 = vmatprep.subr.mxu0 0.0
        %512 = vmatpush1.msra.mxu0 %v433
        %513 = vmatprep.subr.mxu0 0.0
        %514 = vmatpush1.msra.mxu0 %v432
        %515 = vmatprep.subr.mxu0 0.0
        %516 = vmatpush1.msra.mxu0 %v431
        %517 = vmatprep.subr.mxu0 0.0
        %518 = vmatpush1.msra.mxu0 %v430
        %519 = vmatprep.subr.mxu0 0.0
        %520 = vmatpush1.msra.mxu0 %v429
        %521 = vmatprep.subr.mxu0 0.0
        %522 = vmatpush1.msra.mxu0 %v428
        %523 = vmatprep.subr.mxu0 0.0
        %524 = vmatpush1.msra.mxu0 %v427
        %525 = vmatprep.subr.mxu0 0.0
        %526 = vmatpush1.msra.mxu0 %v426
        %527 = vmatprep.subr.mxu0 0.0
        %528 = vmatpush1.msra.mxu0 %v425
        %529 = vmatprep.subr.mxu0 0.0
        %530 = vmatpush1.msra.mxu0 %v424
        %531 = vmatprep.subr.mxu0 0.0
        %532 = vmatpush1.msra.mxu0 %v423
        %533 = vmatprep.subr.mxu0 0.0
        %534 = vmatpush1.msra.mxu0 %v422
        %535 = vmatprep.subr.mxu0 0.0
        %536 = vmatpush1.msra.mxu0 %v421
        %537 = vmatprep.subr.mxu0 0.0
        %538 = vmatpush2.msra.mxu0 %v452
        %539 = vmatprep.subr.mxu0 0.0
        %540 = vmatpush2.msra.mxu0 %v451
        %541 = vmatprep.subr.mxu0 0.0
        %542 = vmatpush2.msra.mxu0 %v450
        %543 = vmatprep.subr.mxu0 0.0
        %544 = vmatpush2.msra.mxu0 %v449
        %545 = vmatprep.subr.mxu0 0.0
        %546 = vmatpush2.msra.mxu0 %v448
        %547 = vmatprep.subr.mxu0 0.0
        %548 = vmatpush2.msra.mxu0 %v447
        %549 = vmatprep.subr.mxu0 0.0
        %550 = vmatpush2.msra.mxu0 %v446
        %551 = vmatprep.subr.mxu0 0.0
        %552 = vmatpush2.msra.mxu0 %v445
        %553 = vmatprep.subr.mxu0 0.0
        %554 = vmatpush2.msra.mxu0 %v444
        %555 = vmatprep.subr.mxu0 0.0
        %556 = vmatpush2.msra.mxu0 %v443
        %557 = vmatprep.subr.mxu0 0.0
        %558 = vmatpush2.msra.mxu0 %v442
        %559 = vmatprep.subr.mxu0 0.0
        %560 = vmatpush2.msra.mxu0 %v441
        %561 = vmatprep.subr.mxu0 0.0
        %562 = vmatpush2.msra.mxu0 %v440
        %563 = vmatprep.subr.mxu0 0.0
        %564 = vmatpush2.msra.mxu0 %v439
        %565 = vmatprep.subr.mxu0 0.0
        %566 = vmatpush2.msra.mxu0 %v438
        %567 = vmatprep.subr.mxu0 0.0
        %568 = vmatpush2.msra.mxu0 %v437
        %569 = vmatprep.mubr.f32.mxu0 %v494
        %570 = vmatmul.mubr.f32.gmra.mxu0 %v493
        %v571 = vpop.f32.mrf.mxu0
        %v572 = vadd.f32 %v501, %v571
        %v573 = vpop.f32.mrf.mxu0
        %574 = vmatprep.mubr.f32.mxu0 %v496
        %575 = vmatmul.mubr.f32.gmra.mxu0 %v495
        %v576 = vpop.f32.mrf.mxu0
        %v577 = vadd.f32 %v502, %v576
        %v578 = vpop.f32.mrf.mxu0
        %579 = vmatprep.mubr.f32.mxu0 %v498
        %580 = vmatmul.mubr.f32.gmra.mxu0 %v497
        %v581 = vpop.f32.mrf.mxu0
        %v582 = vadd.f32 %v503, %v581
        %v583 = vpop.f32.mrf.mxu0
        %584 = vmatprep.mubr.f32.mxu0 %v500
        %585 = vmatmul.mubr.f32.gmra.mxu0 %v499
        %v586 = vpop.f32.mrf.mxu0
        %v587 = vadd.f32 %v504, %v586
        %v588 = vpop.f32.mrf.mxu0
        %589 = vdwg.mxu0
        %vm590 = vcmask 138240
        %591 = vst.msk [vmem:[%s267] sm:$0xff] %vm590, %v572
        %592 = vst.msk [vmem:[%s267 + $0x8] sm:$0xff] %vm590, %v577
        %593 = vst.msk [vmem:[%s267 + $0x10] sm:$0xff] %vm590, %v582
        %594 = vst.msk [vmem:[%s267 + $0x18] sm:$0xff] %vm590, %v587
      $region48: #{tpu_custom_call.1} parent=39 // pred_fallthru
        _
      %p595 = scmp.lt.s32.totalorder %s20, 1
      %s596 = scalar_select %p595, %s20, 1
      %s597 = smul.addr %s596, 4
      %s598 = smul.addr %s597, 8
      %s599 = scalar_lea.vmem %s5, %s598
      // Predicated region
      $region49: #{tpu_custom_call.1} parent=39 // pred_check
        %p600 = pneg %p163
      $region50: #{tpu_custom_call.1} parent=39 // pred_check_branch
        %602 = sbr.rel (%p600) target = $region52
      $region51: #{tpu_custom_call.1} parent=39 // pred_region
        _
      $region52: #{tpu_custom_call.1} parent=39 // pred_fallthru
        _
    $region40: #{tpu_custom_call.1} parent=5 // pred_fallthru
      _
    %p603 = scmp.le.s32.totalorder 2, %s11
    // Predicated region
    $region53: #{tpu_custom_call.1} parent=5 // pred_check
      %p604 = pneg %p603
    $region54: #{tpu_custom_call.1} parent=5 // pred_check_branch
      %606 = sbr.rel (%p604) target = $region56
    $region55: #{tpu_custom_call.1} parent=5 // pred_region
      %s607 = ssub.s32 %s11, 2
      // Predicated region
      $region57: #{tpu_custom_call.1} parent=55 // pred_check
        %p608 = pneg %p169
      $region58: #{tpu_custom_call.1} parent=55 // pred_check_branch
        %610 = sbr.rel (%p608) target = $region60
      $region59: #{tpu_custom_call.1} parent=55 // pred_region
        %p611 = scmp.lt.s32.totalorder %s22, 1
        %s612 = scalar_select %p611, %s22, 1
        %s613 = smul.addr %s612, 4
        %s614 = smul.addr %s613, 8
        %s615 = scalar_lea.vmem %s5, %s614
      $region60: #{tpu_custom_call.1} parent=55 // pred_fallthru
        _
    $region56: #{tpu_custom_call.1} parent=5 // pred_fallthru
      _
  $region6: #{tpu_custom_call.1} parent=0 // loop_footer
    %s15 = sadd.s32 1, %s11
  $region7: #{tpu_custom_call.1} parent=0 // loop_footer_branch
    %10 = sbr.rel target = $region3
  $region8: #{tpu_custom_call.1} parent=0 // loop_exit
    _

</llo_original>
